<compile_context>
chip_gen: v5e
topology: v5e:2x2
jax: 0.10.0
libtpu: 0.0.40
codegen_flags: <defaults>
</compile_context>

<pallas_src>
import functools

import jax
import jax.numpy as jnp
from jax import lax
from jax.experimental import pallas as pl
from jax.experimental.pallas import tpu as pltpu


def _dirichlet_boundary_kernel(x_ref, mask_ref, o_ref, *, td, tiles_per_split,
                               depth, inv_nhw, last_local, ragged):
    """One (batch, D-split, D-tile) grid step.

    x_ref:    (1, 1, td, HW)  channel-0 slab (flattened H*W plane, lane-dense)
    mask_ref: (1, HW)         h/w-face weights (constant block index -> VMEM resident)
    o_ref:    (1, 1, HW)      per-(batch, split) partial sum, resident across axis 2
    """
    s = pl.program_id(1)
    j = pl.program_id(2)
    n_s = pl.num_programs(1)
    n_j = pl.num_programs(2)

    # Fused upcast + square + row reduction; live state stays O(HW), not O(td*HW) f32.
    sq = jnp.square(x_ref[0, 0].astype(jnp.float32))            # (td, HW)
    if ragged:
        # Only the globally-last tile runs past `depth`; select out the padded rows
        # (select, not multiply, so stale/garbage VMEM rows can never contribute).
        tile_start = (s * tiles_per_split + j) * td
        row = lax.broadcasted_iota(jnp.int32, (td, 1), 0)
        sq = jnp.where(row < depth - tile_start, sq, 0.0)
    col = jnp.sum(sq, axis=0, keepdims=True)                     # (1, HW)

    # d == 0 and d == depth-1 faces live in exactly one tile each; gate them with
    # scalar weights so the whole step collapses to a single accumulate below.
    w0 = jnp.where(jnp.logical_and(s == 0, j == 0), inv_nhw, 0.0)
    w1 = jnp.where(jnp.logical_and(s == n_s - 1, j == n_j - 1), inv_nhw, 0.0)
    p0 = x_ref[0, 0, 0:1, :].astype(jnp.float32)                 # (1, HW)
    p1 = x_ref[0, 0, last_local:last_local + 1, :].astype(jnp.float32)

    contrib = col * mask_ref[...] + w0 * jnp.square(p0) + w1 * jnp.square(p1)

    # Exactly one store (j == 0) or one load+store (j > 0) of the (1, HW) plane per step.
    @pl.when(j == 0)
    def _():
        o_ref[0] = contrib

    @pl.when(j > 0)
    def _():
        o_ref[0] += contrib


def _choose_td(d, plane_bytes, budget_bytes):
    """Tile depth: whole depth if it fits the per-block budget, else the largest
    8-aligned (sublane) depth that fits.  Never collapses to 1 for awkward D."""
    if d * plane_bytes <= budget_bytes:
        return d
    max_td = budget_bytes // max(1, plane_bytes)
    td = (max_td // 8) * 8
    if td < 8:
        # A single (H*W) plane exceeds the budget; fall back to thin 8-deep slabs.
        # TODO(synk): for very wide grids (W*itemsize >= ~2 KiB) stream only the
        # boundary row/column slabs instead of the full interior volume.
        td = 8
    return min(td, d)


def dirichlet_boundary_loss(output, bound_weight, *, block_budget_bytes=None):
    """output: (N, C, D, H, W) array.  Returns the scalar float32 boundary loss."""
    n, c, d, h, w = output.shape
    hw = h * w
    itemsize = jnp.dtype(output.dtype).itemsize
    plane_bytes = hw * itemsize

    # Generation-aware budgets: v5e/v6e have 128 MiB VMEM per core, v7x only 64 MiB.
    try:
        vmem_cap = pltpu.get_tpu_info().vmem_capacity_bytes
    except Exception:  # non-TPU / interpret fallbacks
        vmem_cap = 64 * 1024 * 1024
    if vmem_cap >= 96 * 1024 * 1024:        # v5e / v6e (128 MiB VMEM)
        budget = 8 * 1024 * 1024
        vmem_ceiling = 64 * 1024 * 1024
    else:                                    # v7x (64 MiB VMEM per TensorCore)
        budget = 8 * 1024 * 1024
        vmem_ceiling = 48 * 1024 * 1024
    if block_budget_bytes is not None:
        budget = int(block_budget_bytes)

    td = _choose_td(d, plane_bytes, budget)
    nt = pl.cdiv(d, td)                      # number of D-tiles (cdiv: ragged allowed)
    ragged = (d % td) != 0
    # Split the D reduction so both v7x TensorCores get work even at N == 1; a no-op
    # on single-TC v5e/v6e and for single-tile depths.
    n_split = 2 if (nt >= 2 and nt % 2 == 0) else 1
    tiles_per_split = nt // n_split
    last_local = (d - 1) - (nt - 1) * td     # static local row of the d == D-1 face

    inv_nhw = 1.0 / float(n * h * w)
    inv_ndw = 1.0 / float(n * d * w)
    inv_ndh = 1.0 / float(n * d * h)

    # (1, H*W) face-weight mask for the four h/w faces (its block index never changes,
    # so it stays resident in VMEM).
    hidx = jnp.arange(h, dtype=jnp.int32)[:, None]
    widx = jnp.arange(w, dtype=jnp.int32)[None, :]
    mask_hw = (inv_ndw * ((hidx == 0).astype(jnp.float32)
                          + (hidx == h - 1).astype(jnp.float32))
               + inv_ndh * ((widx == 0).astype(jnp.float32)
                            + (widx == w - 1).astype(jnp.float32)))
    mask_hw = mask_hw.reshape(1, hw)

    # Lane-dense layout: flatten the (H, W) plane (free on contiguous NCDHW).
    x = output.reshape(n, c, d, hw)

    block_bytes = td * hw * itemsize
    vmem_limit = int(min(max(32 * 1024 * 1024, 3 * block_bytes + (4 << 20)),
                         vmem_ceiling))

    cost = pl.CostEstimate(
        flops=int(4 * n * d * hw),
        transcendentals=0,
        bytes_accessed=int(n * d * hw * itemsize + hw * 4 + n * n_split * hw * 4),
    )

    kernel = functools.partial(
        _dirichlet_boundary_kernel, td=td, tiles_per_split=tiles_per_split,
        depth=d, inv_nhw=inv_nhw, last_local=last_local, ragged=ragged)

    partials = pl.pallas_call(
        kernel,
        out_shape=jax.ShapeDtypeStruct((n, n_split, hw), jnp.float32),
        grid_spec=pltpu.PrefetchScalarGridSpec(
            num_scalar_prefetch=0,
            grid=(n, n_split, tiles_per_split),
            in_specs=[
                # Channel 0 selected here -> no wrapper slice / extra HBM traffic.
                pl.BlockSpec((1, 1, td, hw),
                             lambda i, s, j: (i, 0, s * tiles_per_split + j, 0)),
                # Constant-index face-weight mask.
                pl.BlockSpec((1, hw), lambda i, s, j: (0, 0)),
            ],
            out_specs=pl.BlockSpec((1, 1, hw), lambda i, s, j: (i, s, 0)),
        ),
        compiler_params=pltpu.CompilerParams(
            dimension_semantics=("parallel", "parallel", "arbitrary"),
            vmem_limit_bytes=vmem_limit,
        ),
        cost_estimate=cost,
    )(x, mask_hw)

    # Tiny final collapse + weight scale (keeps bound_weight out of the compiled kernel).
    return jnp.sum(partials) * jnp.float32(bound_weight)


def _reference_loss(output, bound_weight):
    """Plain-JAX reference mirroring the PyTorch forward exactly."""
    o = output.astype(jnp.float32)
    loss = jnp.mean(o[:, 0, -1, :, :] ** 2)
    loss += jnp.mean(o[:, 0, :, 0, :] ** 2)
    loss += jnp.mean(o[:, 0, :, -1, :] ** 2)
    loss += jnp.mean(o[:, 0, 0, :, :] ** 2)
    loss += jnp.mean(o[:, 0, :, :, 0] ** 2)
    loss += jnp.mean(o[:, 0, :, :, -1] ** 2)
    return loss * bound_weight


if __name__ == "__main__":
    key = jax.random.PRNGKey(0)
    bound_weight = 0.5
    k0, k1, k2 = jax.random.split(key, 3)

    # Main shape implied by the module (NCDHW).
    N, C, D, H, W = 2, 4, 16, 16, 16
    x_main = jax.random.normal(k0, (N, C, D, H, W), dtype=jnp.float32)
    loss_fn = jax.jit(dirichlet_boundary_loss)
    loss = jax.block_until_ready(loss_fn(x_main, bound_weight))
    ref = _reference_loss(x_main, bound_weight)
    assert jnp.allclose(loss, ref, rtol=1e-4, atol=1e-6), (loss, ref)

    # Multi-tile + ragged-D path (forced tiny block budget so D tiles at td = 8).
    x_rag = jax.random.normal(k1, (1, 2, 20, 8, 128), dtype=jnp.float32)
    rag_fn = jax.jit(functools.partial(dirichlet_boundary_loss,
                                       block_budget_bytes=8 * 128 * 4 * 8))
    loss_rag = jax.block_until_ready(rag_fn(x_rag, bound_weight))
    ref_rag = _reference_loss(x_rag, bound_weight)
    assert jnp.allclose(loss_rag, ref_rag, rtol=1e-4, atol=1e-6), (loss_rag, ref_rag)

    # Even tile count -> D-split path (two "parallel" partials summed in the wrapper).
    x_split = jax.random.normal(k2, (1, 3, 32, 8, 128), dtype=jnp.float32)
    split_fn = jax.jit(functools.partial(dirichlet_boundary_loss,
                                         block_budget_bytes=8 * 128 * 4 * 8))
    loss_split = jax.block_until_ready(split_fn(x_split, bound_weight))
    ref_split = _reference_loss(x_split, bound_weight)
    assert jnp.allclose(loss_split, ref_split, rtol=1e-4, atol=1e-6), (loss_split, ref_split)

    print("KERNEL_OK")
</pallas_src>

<mosaic_0001>
module attributes {stable_mosaic.version = 11 : i64} {
  func.func @_dirichlet_boundary_kernel(%arg0: i32, %arg1: i32, %arg2: i32, %arg3: memref<1x1x16x256xf32, #tpu.memory_space<vmem>>, %arg4: memref<1x256xf32, #tpu.memory_space<vmem>>, %arg5: memref<1x1x256xf32, #tpu.memory_space<vmem>>) attributes {dimension_semantics = [#tpu.dimension_semantics<parallel>, #tpu.dimension_semantics<parallel>, #tpu.dimension_semantics<arbitrary>], iteration_bounds = array<i64: 2, 1, 1>, scalar_prefetch = 0 : i64, scratch_operands = 0 : i64, tpu.core_type = #tpu.core_type<tc>, window_params = [{transform_indices = @transform_0, window_bounds = array<i64: 1, 1, 16, 256>}, {pipeline_mode = #tpu.pipeline_mode<synchronous>, transform_indices = @transform_1, window_bounds = array<i64: 1, 256>}, {transform_indices = @transform_2, window_bounds = array<i64: 1, 1, 256>}]} {
    %c0 = arith.constant 0 : index
    %c0_0 = arith.constant 0 : index
    %c0_1 = arith.constant 0 : index
    %c0_2 = arith.constant 0 : index
    %0 = vector.load %arg3[%c0, %c0_0, %c0_1, %c0_2] : memref<1x1x16x256xf32, #tpu.memory_space<vmem>>, vector<1x1x16x256xf32>
    %1 = vector.shape_cast %0 : vector<1x1x16x256xf32> to vector<16x256xf32>
    %2 = arith.mulf %1, %1 : vector<16x256xf32>
    %cst = arith.constant dense<0.000000e+00> : vector<256xf32>
    %3 = vector.multi_reduction <add>, %2, %cst [0] : vector<16x256xf32> to vector<256xf32>
    %4 = vector.shape_cast %3 : vector<256xf32> to vector<1x256xf32>
    %c0_i32 = arith.constant 0 : i32
    %5 = arith.cmpi eq, %arg1, %c0_i32 : i32
    %c0_i32_3 = arith.constant 0 : i32
    %6 = arith.cmpi eq, %arg2, %c0_i32_3 : i32
    %7 = arith.andi %5, %6 : i1
    %cst_4 = arith.constant 0.001953125 : f32
    %cst_5 = arith.constant 0.000000e+00 : f32
    %8 = arith.select %7, %cst_4, %cst_5 : f32
    %c0_i32_6 = arith.constant 0 : i32
    %9 = arith.cmpi eq, %arg1, %c0_i32_6 : i32
    %c0_i32_7 = arith.constant 0 : i32
    %10 = arith.cmpi eq, %arg2, %c0_i32_7 : i32
    %11 = arith.andi %9, %10 : i1
    %cst_8 = arith.constant 0.001953125 : f32
    %cst_9 = arith.constant 0.000000e+00 : f32
    %12 = arith.select %11, %cst_8, %cst_9 : f32
    %c0_10 = arith.constant 0 : index
    %c0_11 = arith.constant 0 : index
    %c0_12 = arith.constant 0 : index
    %c0_13 = arith.constant 0 : index
    %13 = vector.load %arg3[%c0_10, %c0_11, %c0_12, %c0_13] : memref<1x1x16x256xf32, #tpu.memory_space<vmem>>, vector<1x1x1x256xf32>
    %14 = vector.shape_cast %13 : vector<1x1x1x256xf32> to vector<1x256xf32>
    %c0_14 = arith.constant 0 : index
    %c0_15 = arith.constant 0 : index
    %c15 = arith.constant 15 : index
    %c0_16 = arith.constant 0 : index
    %15 = vector.load %arg3[%c0_14, %c0_15, %c15, %c0_16] : memref<1x1x16x256xf32, #tpu.memory_space<vmem>>, vector<1x1x1x256xf32>
    %16 = vector.shape_cast %15 : vector<1x1x1x256xf32> to vector<1x256xf32>
    %c0_17 = arith.constant 0 : index
    %c0_18 = arith.constant 0 : index
    %17 = vector.load %arg4[%c0_17, %c0_18] : memref<1x256xf32, #tpu.memory_space<vmem>>, vector<1x256xf32>
    %18 = arith.mulf %4, %17 : vector<1x256xf32>
    %19 = arith.mulf %14, %14 : vector<1x256xf32>
    %20 = vector.broadcast %8 : f32 to vector<1x256xf32>
    %21 = arith.mulf %20, %19 : vector<1x256xf32>
    %22 = arith.addf %18, %21 : vector<1x256xf32>
    %23 = arith.mulf %16, %16 : vector<1x256xf32>
    %24 = vector.broadcast %12 : f32 to vector<1x256xf32>
    %25 = arith.mulf %24, %23 : vector<1x256xf32>
    %26 = arith.addf %22, %25 : vector<1x256xf32>
    %c0_i32_19 = arith.constant 0 : i32
    %27 = arith.cmpi eq, %arg2, %c0_i32_19 : i32
    %28 = arith.extui %27 : i1 to i32
    %c0_i32_20 = arith.constant 0 : i32
    %29 = arith.cmpi ne, %28, %c0_i32_20 : i32
    scf.if %29 {
      %c0_23 = arith.constant 0 : index
      %c0_24 = arith.constant 0 : index
      %c0_25 = arith.constant 0 : index
      %33 = vector.load %arg5[%c0_23, %c0_24, %c0_25] : memref<1x1x256xf32, #tpu.memory_space<vmem>>, vector<1x1x256xf32>
      %34 = vector.shape_cast %33 : vector<1x1x256xf32> to vector<1x256xf32>
      %35 = vector.shape_cast %26 : vector<1x256xf32> to vector<1x1x256xf32>
      tpu.vector_store %arg5[%c0_23, %c0_24, %c0_25], %35 {strides = array<i32>} : memref<1x1x256xf32, #tpu.memory_space<vmem>>, vector<1x1x256xf32>,
    } else {
    }
    %c0_i32_21 = arith.constant 0 : i32
    %30 = arith.cmpi sgt, %arg2, %c0_i32_21 : i32
    %31 = arith.extui %30 : i1 to i32
    %c0_i32_22 = arith.constant 0 : i32
    %32 = arith.cmpi ne, %31, %c0_i32_22 : i32
    scf.if %32 {
      %c0_23 = arith.constant 0 : index
      %c0_24 = arith.constant 0 : index
      %c0_25 = arith.constant 0 : index
      %33 = vector.load %arg5[%c0_23, %c0_24, %c0_25] : memref<1x1x256xf32, #tpu.memory_space<vmem>>, vector<1x1x256xf32>
      %34 = vector.shape_cast %33 : vector<1x1x256xf32> to vector<1x256xf32>
      %35 = arith.addf %34, %26 : vector<1x256xf32>
      %c0_26 = arith.constant 0 : index
      %c0_27 = arith.constant 0 : index
      %c0_28 = arith.constant 0 : index
      %36 = vector.load %arg5[%c0_26, %c0_27, %c0_28] : memref<1x1x256xf32, #tpu.memory_space<vmem>>, vector<1x1x256xf32>
      %37 = vector.shape_cast %36 : vector<1x1x256xf32> to vector<1x256xf32>
      %38 = vector.shape_cast %35 : vector<1x256xf32> to vector<1x1x256xf32>
      tpu.vector_store %arg5[%c0_26, %c0_27, %c0_28], %38 {strides = array<i32>} : memref<1x1x256xf32, #tpu.memory_space<vmem>>, vector<1x1x256xf32>,
    } else {
    }
    return
  }
  func.func @transform_0(%arg0: i32, %arg1: i32, %arg2: i32) -> (i32, i32, i32, i32) {
    %c1_i32 = arith.constant 1 : i32
    %0 = arith.muli %arg1, %c1_i32 : i32
    %1 = arith.addi %0, %arg2 : i32
    %c0_i32 = arith.constant 0 : i32
    %c0_i32_0 = arith.constant 0 : i32
    %c0_i32_1 = arith.constant 0 : i32
    return %arg0, %c0_i32, %1, %c0_i32_0 : i32, i32, i32, i32
  }
  func.func @transform_1(%arg0: i32, %arg1: i32, %arg2: i32) -> (i32, i32) {
    %c0_i32 = arith.constant 0 : i32
    %c0_i32_0 = arith.constant 0 : i32
    %c0_i32_1 = arith.constant 0 : i32
    return %c0_i32, %c0_i32_0 : i32, i32
  }
  func.func @transform_2(%arg0: i32, %arg1: i32, %arg2: i32) -> (i32, i32, i32) {
    %c0_i32 = arith.constant 0 : i32
    %c0_i32_0 = arith.constant 0 : i32
    return %arg0, %arg1, %c0_i32 : i32, i32, i32
  }
}

</mosaic_0001>

<llo_original>
// kernel: dirichlet_boundary_loss.1
$region0: #{dirichlet_boundary_loss.1}
  #allocation0 [shape = 'u32[]', space=smem, size = 0x4, offset = 0x4, fixed_abs, tag = 'smem constant byte address 0x4 - core index']
  #allocation1 [shape = 'u32[72,128]{1,0:T(1,128)}', space=vmem, size = 0x9000, scoped, tag = 'internal scratch']
  %s0 = inlined_call_operand.vmem [shape: f32[2,4,16,256], index: 0, kind: input, shape index: {}]
  %s1 = inlined_call_operand.vmem [shape: f32[1,256], index: 1, kind: input, shape index: {}]
  %s2 = inlined_call_operand.vmem [shape: f32[2,1,256], index: 2, kind: output, shape index: {}]
  %s3 = sld [smem:[#allocation0]]
  $region49: #{dirichlet_boundary_loss.1} parent=0
    _
  %s5 = ssub.s32 1, %s3
  %s6 = scalar_select 0, %s5, %s3
  loop: start=0, step=1, limit=4
  $region2: #{dirichlet_boundary_loss.1} parent=0 // loop_pre_header
    _
  $region3: #{dirichlet_boundary_loss.1} parent=0 // loop_header
    %s8 = sphi 0, %s12
    %p9 = scmp.ge.s32.totalorder %s8, 4
    %s15 = sphi 0, %s34
    %s16 = sphi 0, %s30
    %s17 = sphi 0, %s26
    %s18 = sphi 0, %s15
    %s19 = sphi 0, %s16
    %s20 = sphi 0, %s17
    %s21 = sphi 0, %s18
    %s22 = sphi 0, %s19
    %s23 = sphi 0, %s20
    %s41 = sphi 0, %s43
    %s44 = sphi 0, %s41
    %s45 = sphi 0, %s44
    %s61 = sphi 0, %s45
    %s65 = sphi 0, %s65
    %s67 = sphi 0, %s65
    %s68 = sphi 0, %s67
    %s82 = sphi 0, %s68
    %s90 = sphi 0, %s92
    %s93 = sphi 0, %s90
    %s94 = sphi 0, %s93
    %s110 = sphi 0, %s94
  $region4: #{dirichlet_boundary_loss.1} parent=0 // loop_header_branch
    %11 = sbr.rel (%p9) target = $region8
  $region5: #{dirichlet_boundary_loss.1} parent=0 // loop_body
    %s13 = ssub.s32 %s8, 1
    %s14 = ssub.s32 %s8, 2
    %s24 = sadd.s32 1, %s17
    %p25 = scmp.ge.s32.totalorder %s24, 1
    %s26 = scalar_select %p25, 0, %s24
    %s27 = sadd.s32 1, %s16
    %s28 = scalar_select %p25, %s27, %s16
    %p29 = scmp.ge.s32.totalorder %s28, 1
    %s30 = scalar_select %p29, 0, %s28
    %s31 = sadd.s32 1, %s15
    %s32 = scalar_select %p29, %s31, %s15
    %p33 = scmp.ge.s32.totalorder %s32, 2
    %s34 = scalar_select %p33, 0, %s32
    %s35 = sadd.s32 %s16, %s17
    %s36 = sadd.s32 %s30, %s26
    %s37 = ssub.s32 %s15, %s34
    %s38 = ssub.s32 %s35, %s36
    %s39 = sor.u32 %s37, %s38
    %p40 = scmp.eq.s32.totalorder %s39, 0
    %s42 = sadd.s32 %s41, 1
    %s43 = scalar_select %p40, %s41, %s42
    %p46 = pneg %p40
    %p47 = scmp.eq.s32.totalorder %s8, 1
    %p48 = por %p46, %p47
    %p49 = scmp.ne.s32.totalorder %s41, %s44
    %p50 = scmp.eq.s32.totalorder %s8, 0
    %p51 = por %p49, %p50
    %p52 = scmp.ne.s32.totalorder %s41, %s44
    %p53 = scmp.eq.s32.totalorder %s13, 1
    %p54 = por %p52, %p53
    %p55 = scmp.ne.s32.totalorder %s44, %s45
    %p56 = scmp.eq.s32.totalorder %s13, 0
    %p57 = por %p55, %p56
    %p58 = scmp.ne.s32.totalorder %s44, %s45
    %p59 = scmp.eq.s32.totalorder %s14, 1
    %p60 = por %p58, %p59
    %p62 = scmp.ne.s32.totalorder %s45, %s61
    %p63 = scmp.eq.s32.totalorder %s14, 0
    %p64 = por %p62, %p63
    %s66 = sadd.s32 %s65, 1
    %p69 = scmp.eq.s32.totalorder %s8, 1
    %p70 = scmp.ne.s32.totalorder %s65, %s67
    %p71 = scmp.eq.s32.totalorder %s8, 0
    %p72 = por %p70, %p71
    %p73 = scmp.ne.s32.totalorder %s65, %s67
    %p74 = scmp.eq.s32.totalorder %s13, 1
    %p75 = por %p73, %p74
    %p76 = scmp.ne.s32.totalorder %s67, %s68
    %p77 = scmp.eq.s32.totalorder %s13, 0
    %p78 = por %p76, %p77
    %p79 = scmp.ne.s32.totalorder %s67, %s68
    %p80 = scmp.eq.s32.totalorder %s14, 1
    %p81 = por %p79, %p80
    %p83 = scmp.ne.s32.totalorder %s68, %s82
    %p84 = scmp.eq.s32.totalorder %s14, 0
    %p85 = por %p83, %p84
    %s86 = ssub.s32 %s15, %s34
    %s87 = ssub.s32 %s16, %s30
    %s88 = sor.u32 %s86, %s87
    %p89 = scmp.eq.s32.totalorder %s88, 0
    %s91 = sadd.s32 %s90, 1
    %s92 = scalar_select %p89, %s90, %s91
    %p95 = pneg %p89
    %p96 = scmp.eq.s32.totalorder %s8, 1
    %p97 = por %p95, %p96
    %p98 = scmp.ne.s32.totalorder %s90, %s93
    %p99 = scmp.eq.s32.totalorder %s8, 0
    %p100 = por %p98, %p99
    %p101 = scmp.ne.s32.totalorder %s90, %s93
    %p102 = scmp.eq.s32.totalorder %s13, 1
    %p103 = por %p101, %p102
    %p104 = scmp.ne.s32.totalorder %s93, %s94
    %p105 = scmp.eq.s32.totalorder %s13, 0
    %p106 = por %p104, %p105
    %p107 = scmp.ne.s32.totalorder %s93, %s94
    %p108 = scmp.eq.s32.totalorder %s14, 1
    %p109 = por %p107, %p108
    %p111 = scmp.ne.s32.totalorder %s94, %s110
    %p112 = scmp.eq.s32.totalorder %s14, 0
    %p113 = por %p111, %p112
    %p114 = scmp.le.s32.totalorder 1, %s8
    %p115 = scmp.lt.s32.totalorder %s8, 3
    %p116 = pnand %p114, %p115
    %p117 = pneg %p116
    // Predicated region
    $region9: #{dirichlet_boundary_loss.1} parent=5 // pred_check
      _
    $region10: #{dirichlet_boundary_loss.1} parent=5 // pred_check_branch
      %119 = sbr.rel (%p116) target = $region12
    $region11: #{dirichlet_boundary_loss.1} parent=5 // pred_region
      %s120 = ssub.s32 %s8, 1
      // Predicated region
      $region13: #{dirichlet_boundary_loss.1} parent=11 // pred_check
        %p121 = pneg %p78
      $region14: #{dirichlet_boundary_loss.1} parent=11 // pred_check_branch
        %123 = sbr.rel (%p121) target = $region16
      $region15: #{dirichlet_boundary_loss.1} parent=11 // pred_region
        _
      $region16: #{dirichlet_boundary_loss.1} parent=11 // pred_fallthru
        _
    $region12: #{dirichlet_boundary_loss.1} parent=5 // pred_fallthru
      _
    %p124 = scmp.lt.s32.totalorder %s8, 2
    // Predicated region
    $region17: #{dirichlet_boundary_loss.1} parent=5 // pred_check
      %p125 = pneg %p124
    $region18: #{dirichlet_boundary_loss.1} parent=5 // pred_check_branch
      %127 = sbr.rel (%p125) target = $region20
    $region19: #{dirichlet_boundary_loss.1} parent=5 // pred_region
      // Predicated region
      $region21: #{dirichlet_boundary_loss.1} parent=19 // pred_check
        %p128 = pneg %p51
      $region22: #{dirichlet_boundary_loss.1} parent=19 // pred_check_branch
        %130 = sbr.rel (%p128) target = $region24
      $region23: #{dirichlet_boundary_loss.1} parent=19 // pred_region
        %s131 = sadd.s32 %s16, %s17
        %s132 = smul.u32 2, %s131
        %p133 = scmp.lt.s32.totalorder %s15, 1
        %s134 = scalar_select %p133, %s15, 1
        %p135 = scmp.lt.s32.totalorder %s132, 1
        %s136 = scalar_select %p135, %s132, 1
        %s137 = smul.addr %s136, 2
        %s138 = smul.addr %s134, 16
        %s139 = sadd.s32 %s137, %s138
        %s140 = smul.addr %s139, 8
        %s141 = scalar_lea.vmem %s0, %s140
        %s142 = sadd.s32 %s16, %s17
        %s143 = smul.u32 2, %s142
      $region24: #{dirichlet_boundary_loss.1} parent=19 // pred_fallthru
        _
    $region20: #{dirichlet_boundary_loss.1} parent=5 // pred_fallthru
      _
    %p144 = scmp.le.s32.totalorder 1, %s8
    %p145 = scmp.lt.s32.totalorder %s8, 3
    %p146 = pnand %p144, %p145
    %p147 = pneg %p146
    // Predicated region
    $region25: #{dirichlet_boundary_loss.1} parent=5 // pred_check
      _
    $region26: #{dirichlet_boundary_loss.1} parent=5 // pred_check_branch
      %149 = sbr.rel (%p146) target = $region28
    $region27: #{dirichlet_boundary_loss.1} parent=5 // pred_region
      %s150 = ssub.s32 %s8, 1
      %s151 = sadd.s32 %s19, %s20
      %s152 = smul.u32 2, %s151
      %p153 = scmp.lt.s32.totalorder %s18, 1
      %s154 = scalar_select %p153, %s18, 1
      %p155 = scmp.lt.s32.totalorder %s152, 1
      %s156 = scalar_select %p155, %s152, 1
      %s157 = smul.addr %s156, 2
      %s158 = smul.addr %s154, 16
      %s159 = sadd.s32 %s157, %s158
      %s160 = smul.addr %s159, 8
      %s161 = scalar_lea.vmem %s0, %s160
      %p162 = pneg %p57
      %p163 = pneg %p54
      %p164 = pneg %p78
      %p165 = pneg %p75
      %p166 = pneg %p106
      %p167 = pneg %p103
      %p168 = scmp.lt.s32.totalorder %s18, 1
      %s169 = scalar_select %p168, %s18, 1
      %p170 = scmp.lt.s32.totalorder %s19, 0
      %s171 = scalar_select %p170, %s19, 0
      %s172 = smul.addr %s171, 2
      %s173 = smul.addr %s169, 2
      %s174 = sadd.s32 %s172, %s173
      %s175 = scalar_lea.vmem %s2, %s174
      %s176 = sadd.s32 %s19, %s20
      %s177 = smul.u32 2, %s176
      %p178 = scmp.lt.s32.totalorder %s18, 1
      %s179 = scalar_select %p178, %s18, 1
      %p180 = scmp.lt.s32.totalorder %s177, 1
      %s181 = scalar_select %p180, %s177, 1
      %s182 = smul.addr %s181, 2
      %s183 = smul.addr %s179, 16
      %s184 = sadd.s32 %s182, %s183
      %s185 = smul.addr %s184, 8
      %s186 = scalar_lea.vmem %s0, %s185
      %s187 = sadd.s32 %s19, %s20
      %s188 = smul.u32 2, %s187
      %p189 = scmp.lt.s32.totalorder %s18, 1
      %s190 = scalar_select %p189, %s18, 1
      %p191 = scmp.lt.s32.totalorder %s19, 0
      %s192 = scalar_select %p191, %s19, 0
      %s193 = smul.addr %s192, 2
      %s194 = smul.addr %s190, 2
      %s195 = sadd.s32 %s193, %s194
      %s196 = scalar_lea.vmem %s2, %s195
      %v197 = vld [vmem:[%s186] sm:$0xff]
      %v198 = vld [vmem:[%s186 + $0x8] sm:$0xff]
      %v199 = vld [vmem:[%s186 + $0x10] sm:$0xff]
      %v200 = vld [vmem:[%s186 + $0x18] sm:$0xff]
      %v201 = vmul.f32 %v197, %v197
      %v202 = vmul.f32 %v198, %v198
      %v203 = vmul.f32 %v199, %v199
      %v204 = vmul.f32 %v200, %v200
      %v205 = vadd.f32 %v201, %v203
      %v206 = vrot.slane %v205, 4
      %v207 = vadd.f32 %v205, %v206
      %v208 = vrot.slane %v207, 2
      %v209 = vadd.f32 %v207, %v208
      %v210 = vrot.slane %v209, 1
      %v211 = vadd.f32 %v209, %v210
      %v212 = vadd.f32 %v202, %v204
      %v213 = vrot.slane %v212, 4
      %v214 = vadd.f32 %v212, %v213
      %v215 = vrot.slane %v214, 2
      %v216 = vadd.f32 %v214, %v215
      %v217 = vrot.slane %v216, 1
      %v218 = vadd.f32 %v216, %v217
      %p219 = scmp.eq.s32.totalorder %s19, 0
      %p220 = scmp.eq.s32.totalorder %s20, 0
      %p221 = pnand %p219, %p220
      %p222 = pneg %p221
      %s223 = scalar_select %p222, 0.001953125, 0.0
      %v224 = vld [vmem:[%s186] ss:$8 sm:$0x3]
      %s225 = scalar_lea.vmem %s186, 23
      %v226 = vld [vmem:[%s225] ss:$8 sm:$0x3]
      %v227 = vld [vmem:[%s1] sm:$0x3]
      %v229 = vperm.slane %v227, 0
      %v230 = vperm.slane %v227, 1
      %v233 = vmul.f32 %v211, %v229
      %v234 = vmul.f32 %v218, %v230
      %v235 = vmul.f32 %v224, %v224
      %v236 = vstv %s223
      %v237 = vmul.f32 %v236, %v235
      %v239 = vperm.slane %v237, 0
      %v240 = vperm.slane %v237, 1
      %v243 = vadd.f32 %v233, %v239
      %v244 = vadd.f32 %v234, %v240
      %v245 = vmul.f32 %v226, %v226
      %v246 = vmul.f32 %v236, %v245
      %v248 = vperm.slane %v246, 0
      %v249 = vperm.slane %v246, 1
      %v252 = vadd.f32 %v243, %v248
      %v253 = vadd.f32 %v244, %v249
      // Predicated region
      $region29: #{dirichlet_boundary_loss.1} parent=27 // pred_check
        %p254 = pneg %p220
      $region30: #{dirichlet_boundary_loss.1} parent=27 // pred_check_branch
        %256 = sbr.rel (%p254) target = $region32
      $region31: #{dirichlet_boundary_loss.1} parent=27 // pred_region
        %v259 = vrot.slane %v253, 7
        %vm260 = vcmask 1040384
        %v261 = vsel %vm260, %v252, %v259
        %v263 = vlaneseq
        %vm264 = vcmp.ge.s32.totalorder %v263, 0
        %vm265 = vcmp.lt.s32.totalorder %v263, 256
        %vm266 = vmand %vm264, %vm265
        %267 = vst.msk [vmem:[%s196] sm:$0x3] %vm266, %v261
      $region32: #{dirichlet_boundary_loss.1} parent=27 // pred_fallthru
        _
      %p268 = scmp.gt.s32.totalorder %s20, 0
      // Predicated region
      $region33: #{dirichlet_boundary_loss.1} parent=27 // pred_check
        %p269 = pneg %p268
      $region34: #{dirichlet_boundary_loss.1} parent=27 // pred_check_branch
        %271 = sbr.rel (%p269) target = $region36
      $region35: #{dirichlet_boundary_loss.1} parent=27 // pred_region
        %v272 = vld [vmem:[%s196] sm:$0x3]
        %v275 = vrot.slane %v253, 7
        %vm276 = vcmask 1040384
        %v277 = vsel %vm276, %v252, %v275
        %v279 = vadd.f32 %v272, %v277
        %v280 = vlaneseq
        %vm281 = vcmp.ge.s32.totalorder %v280, 0
        %vm282 = vcmp.lt.s32.totalorder %v280, 256
        %vm283 = vmand %vm281, %vm282
        %284 = vst.msk [vmem:[%s196] sm:$0x3] %vm283, %v279
      $region36: #{dirichlet_boundary_loss.1} parent=27 // pred_fallthru
        _
      %p285 = scmp.lt.s32.totalorder %s18, 1
      %s286 = scalar_select %p285, %s18, 1
      %p287 = scmp.lt.s32.totalorder %s19, 0
      %s288 = scalar_select %p287, %s19, 0
      %s289 = smul.addr %s288, 2
      %s290 = smul.addr %s286, 2
      %s291 = sadd.s32 %s289, %s290
      %s292 = scalar_lea.vmem %s2, %s291
      // Predicated region
      $region37: #{dirichlet_boundary_loss.1} parent=27 // pred_check
        %p293 = pneg %p103
      $region38: #{dirichlet_boundary_loss.1} parent=27 // pred_check_branch
        %295 = sbr.rel (%p293) target = $region40
      $region39: #{dirichlet_boundary_loss.1} parent=27 // pred_region
        _
      $region40: #{dirichlet_boundary_loss.1} parent=27 // pred_fallthru
        _
    $region28: #{dirichlet_boundary_loss.1} parent=5 // pred_fallthru
      _
    %p296 = scmp.le.s32.totalorder 2, %s8
    // Predicated region
    $region41: #{dirichlet_boundary_loss.1} parent=5 // pred_check
      %p297 = pneg %p296
    $region42: #{dirichlet_boundary_loss.1} parent=5 // pred_check_branch
      %299 = sbr.rel (%p297) target = $region44
    $region43: #{dirichlet_boundary_loss.1} parent=5 // pred_region
      %s300 = ssub.s32 %s8, 2
      // Predicated region
      $region45: #{dirichlet_boundary_loss.1} parent=43 // pred_check
        %p301 = pneg %p109
      $region46: #{dirichlet_boundary_loss.1} parent=43 // pred_check_branch
        %303 = sbr.rel (%p301) target = $region48
      $region47: #{dirichlet_boundary_loss.1} parent=43 // pred_region
        %p304 = scmp.lt.s32.totalorder %s21, 1
        %s305 = scalar_select %p304, %s21, 1
        %p306 = scmp.lt.s32.totalorder %s22, 0
        %s307 = scalar_select %p306, %s22, 0
        %s308 = smul.addr %s307, 2
        %s309 = smul.addr %s305, 2
        %s310 = sadd.s32 %s308, %s309
        %s311 = scalar_lea.vmem %s2, %s310
      $region48: #{dirichlet_boundary_loss.1} parent=43 // pred_fallthru
        _
    $region44: #{dirichlet_boundary_loss.1} parent=5 // pred_fallthru
      _
  $region6: #{dirichlet_boundary_loss.1} parent=0 // loop_footer
    %s12 = sadd.s32 1, %s8
  $region7: #{dirichlet_boundary_loss.1} parent=0 // loop_footer_branch
    %7 = sbr.rel target = $region3
  $region8: #{dirichlet_boundary_loss.1} parent=0 // loop_exit
    _

</llo_original>
